<compile_context>
chip_gen: v7x
topology: tpu7x:2x2x1
jax: 0.10.0
libtpu: 0.0.40
codegen_flags: <defaults>
</compile_context>

<pallas_src>
import jax
import jax.numpy as jnp
from jax import lax
from jax.experimental import pallas as pl
from jax.experimental.pallas import tpu as pltpu


def tlstm_kernel(x_ref, w_ih_ref, w_hh_ref, b_ref, fc_w_ref, fc_b_ref, out_ref):
    """Single-invocation kernel; (h, c) carried as values through a statically unrolled loop."""
    seq_len = x_ref.shape[0]
    H = w_hh_ref.shape[0]

    # ---- hoisted input projection: one (seq_len, D) x (D, 4H) matmul + bias, vreg-resident ----
    xg = (
        jnp.dot(x_ref[...], w_ih_ref[...], preferred_element_type=jnp.float32)
        + b_ref[...]
    )                                                   # (seq_len, 4H) -- exactly one f32 vreg

    w_hh = w_hh_ref[...]                                # (H, 4H), loaded once

    h = jnp.zeros((1, H), jnp.float32)
    c = jnp.zeros((1, H), jnp.float32)
    h_rows = []

    # static unroll over time; only the recurrent matmul + 2 tanh sit on the serial chain
    for t in range(seq_len):
        gates = xg[t:t + 1, :] + jnp.dot(h, w_hh, preferred_element_type=jnp.float32)  # (1, 4H)

        th = jnp.tanh(gates)          # one full-width EUP transcendental for all 4 gates
        sg = 0.5 * th + 0.5           # sigmoid via tanh identity (i/f/o columns pre-scaled by 0.5)

        i_g = sg[:, 0 * H:1 * H]
        f_g = sg[:, 1 * H:2 * H]
        g_g = th[:, 2 * H:3 * H]      # g-gate columns were NOT pre-scaled -> plain tanh
        o_g = sg[:, 3 * H:4 * H]

        c = f_g * c + i_g * g_g
        h = o_g * jnp.tanh(c)
        h_rows.append(h)

    hs = jnp.concatenate(h_rows, axis=0)                # (seq_len, H), still vreg-resident

    # ---- batched FC + softmax over all timesteps, one store ----
    logits = (
        jnp.dot(hs, fc_w_ref[...], preferred_element_type=jnp.float32)
        + fc_b_ref[...]
    )                                                   # (seq_len, O)
    z = logits - jnp.max(logits, axis=1, keepdims=True)
    e = jnp.exp(z)
    out_ref[...] = e / jnp.sum(e, axis=1, keepdims=True)   # exact softmax over dim=1


def prepare_tlstm_params(w_ih, w_hh, b_ih, b_hh, fc_w, fc_b):
    """One-time weight prep: transposes, bias sum, and 0.5 pre-scaling of the i/f/o gate
    columns so the kernel can use the sigmoid(x) = 0.5*(1 + tanh(x/2)) identity."""
    four_h = w_ih.shape[0]
    H = four_h // 4
    # gate order [i, f, g, o]: scale i/f/o by 0.5, leave g untouched
    scale = jnp.concatenate([
        jnp.full((H,), 0.5, jnp.float32),
        jnp.full((H,), 0.5, jnp.float32),
        jnp.ones((H,), jnp.float32),
        jnp.full((H,), 0.5, jnp.float32),
    ])                                                   # (4H,)
    return dict(
        w_ih_t=(jnp.transpose(w_ih) * scale[None, :]).astype(jnp.float32),   # (D, 4H)
        w_hh_t=(jnp.transpose(w_hh) * scale[None, :]).astype(jnp.float32),   # (H, 4H)
        b=((b_ih + b_hh) * scale).reshape(1, -1).astype(jnp.float32),        # (1, 4H)
        fc_w_t=jnp.transpose(fc_w).astype(jnp.float32),                      # (H, O)
        fc_b=fc_b.reshape(1, -1).astype(jnp.float32),                        # (1, O)
    )


@jax.jit
def tlstm_forward(x, params):
    """x: (seq_len, input_dim) float32; params from prepare_tlstm_params."""
    seq_len = x.shape[0]
    output_dim = params["fc_w_t"].shape[1]

    vmem = pl.BlockSpec(memory_space=pltpu.MemorySpace.VMEM)
    return pl.pallas_call(
        tlstm_kernel,
        out_shape=jax.ShapeDtypeStruct((seq_len, output_dim), jnp.float32),
        in_specs=[vmem] * 6,
        out_specs=vmem,
    )(x.astype(jnp.float32), params["w_ih_t"], params["w_hh_t"],
      params["b"], params["fc_w_t"], params["fc_b"])


def tlstm_reference(x, w_ih, w_hh, b_ih, b_hh, fc_w, fc_b):
    """Pure-JAX reference matching torch.nn.LSTM + Linear + softmax semantics."""
    H = w_hh.shape[1]
    b = b_ih + b_hh

    def step(carry, x_t):
        h, c = carry
        gates = x_t @ w_ih.T + h @ w_hh.T + b
        i_g = jax.nn.sigmoid(gates[0 * H:1 * H])
        f_g = jax.nn.sigmoid(gates[1 * H:2 * H])
        g_g = jnp.tanh(gates[2 * H:3 * H])
        o_g = jax.nn.sigmoid(gates[3 * H:4 * H])
        c_new = f_g * c + i_g * g_g
        h_new = o_g * jnp.tanh(c_new)
        return (h_new, c_new), h_new

    h0 = jnp.zeros((H,), jnp.float32)
    c0 = jnp.zeros((H,), jnp.float32)
    _, hs = lax.scan(step, (h0, c0), x)          # (seq, H)
    logits = hs @ fc_w.T + fc_b                  # (seq, O)
    return jax.nn.softmax(logits, axis=1)


if __name__ == "__main__":
    seq_len = 8
    input_dim = 16
    hidden_dim = 32
    output_dim = 8

    key = jax.random.PRNGKey(0)
    ks = jax.random.split(key, 8)
    k_lstm = 1.0 / jnp.sqrt(hidden_dim)

    x = jax.random.normal(ks[0], (seq_len, input_dim), jnp.float32)
    w_ih = jax.random.uniform(ks[1], (4 * hidden_dim, input_dim), jnp.float32, -k_lstm, k_lstm)
    w_hh = jax.random.uniform(ks[2], (4 * hidden_dim, hidden_dim), jnp.float32, -k_lstm, k_lstm)
    b_ih = jax.random.uniform(ks[3], (4 * hidden_dim,), jnp.float32, -k_lstm, k_lstm)
    b_hh = jax.random.uniform(ks[4], (4 * hidden_dim,), jnp.float32, -k_lstm, k_lstm)
    k_fc = 1.0 / jnp.sqrt(hidden_dim)
    fc_w = jax.random.uniform(ks[5], (output_dim, hidden_dim), jnp.float32, -k_fc, k_fc)
    fc_b = jax.random.uniform(ks[6], (output_dim,), jnp.float32, -k_fc, k_fc)

    params = prepare_tlstm_params(w_ih, w_hh, b_ih, b_hh, fc_w, fc_b)
    out = jax.block_until_ready(tlstm_forward(x, params))

    ref = jax.block_until_ready(tlstm_reference(x, w_ih, w_hh, b_ih, b_hh, fc_w, fc_b))
    assert out.shape == (seq_len, output_dim)
    assert jnp.allclose(out, ref, atol=1e-4, rtol=1e-4), float(jnp.max(jnp.abs(out - ref)))

    print("KERNEL_OK")
</pallas_src>

<mosaic_0001>
module attributes {stable_mosaic.version = 11 : i64} {
  func.func @tlstm_kernel(%arg0: memref<8x16xf32, #tpu.memory_space<vmem>>, %arg1: memref<16x128xf32, #tpu.memory_space<vmem>>, %arg2: memref<32x128xf32, #tpu.memory_space<vmem>>, %arg3: memref<1x128xf32, #tpu.memory_space<vmem>>, %arg4: memref<32x8xf32, #tpu.memory_space<vmem>>, %arg5: memref<1x8xf32, #tpu.memory_space<vmem>>, %arg6: memref<8x8xf32, #tpu.memory_space<vmem>>) attributes {dimension_semantics = [], scalar_prefetch = 0 : i64, scratch_operands = 0 : i64, tpu.core_type = #tpu.core_type<tc>} {
    %c0 = arith.constant 0 : index
    %c0_0 = arith.constant 0 : index
    %0 = vector.load %arg0[%c0, %c0_0] : memref<8x16xf32, #tpu.memory_space<vmem>>, vector<8x16xf32>
    %c0_1 = arith.constant 0 : index
    %c0_2 = arith.constant 0 : index
    %1 = vector.load %arg1[%c0_1, %c0_2] : memref<16x128xf32, #tpu.memory_space<vmem>>, vector<16x128xf32>
    %cst = arith.constant dense<0.000000e+00> : vector<8x128xf32>
    %2 = tpu.matmul %0, %1, %cst {dimension_numbers = #tpu.dot_dimension_numbers<[1], [0], [0], [1], [0, 0, 1, 1], [], []>} : vector<8x16xf32>, vector<16x128xf32>, vector<8x128xf32> -> vector<8x128xf32>
    %c0_3 = arith.constant 0 : index
    %c0_4 = arith.constant 0 : index
    %3 = vector.load %arg3[%c0_3, %c0_4] : memref<1x128xf32, #tpu.memory_space<vmem>>, vector<1x128xf32>
    %4 = vector.broadcast %3 : vector<1x128xf32> to vector<8x128xf32>
    %5 = arith.addf %2, %4 : vector<8x128xf32>
    %c0_5 = arith.constant 0 : index
    %c0_6 = arith.constant 0 : index
    %6 = vector.load %arg2[%c0_5, %c0_6] : memref<32x128xf32, #tpu.memory_space<vmem>>, vector<32x128xf32>
    %cst_7 = arith.constant 0.000000e+00 : f32
    %7 = vector.broadcast %cst_7 : f32 to vector<1x32xf32>
    %cst_8 = arith.constant 0.000000e+00 : f32
    %8 = vector.broadcast %cst_8 : f32 to vector<1x32xf32>
    %9 = vector.extract_strided_slice %5 {offsets = [0, 0], sizes = [1, 128], strides = [1, 1]} : vector<8x128xf32> to vector<1x128xf32>
    %cst_9 = arith.constant dense<0.000000e+00> : vector<1x128xf32>
    %10 = tpu.matmul %7, %6, %cst_9 {dimension_numbers = #tpu.dot_dimension_numbers<[1], [0], [0], [1], [0, 0, 1, 1], [], []>} : vector<1x32xf32>, vector<32x128xf32>, vector<1x128xf32> -> vector<1x128xf32>
    %11 = arith.addf %9, %10 : vector<1x128xf32>
    %12 = math.tanh %11 : vector<1x128xf32>
    %cst_10 = arith.constant 5.000000e-01 : f32
    %13 = vector.broadcast %cst_10 : f32 to vector<1x128xf32>
    %14 = arith.mulf %13, %12 : vector<1x128xf32>
    %cst_11 = arith.constant 5.000000e-01 : f32
    %15 = vector.broadcast %cst_11 : f32 to vector<1x128xf32>
    %16 = arith.addf %14, %15 : vector<1x128xf32>
    %17 = vector.extract_strided_slice %16 {offsets = [0, 0], sizes = [1, 32], strides = [1, 1]} : vector<1x128xf32> to vector<1x32xf32>
    %18 = vector.extract_strided_slice %16 {offsets = [0, 32], sizes = [1, 32], strides = [1, 1]} : vector<1x128xf32> to vector<1x32xf32>
    %19 = vector.extract_strided_slice %12 {offsets = [0, 64], sizes = [1, 32], strides = [1, 1]} : vector<1x128xf32> to vector<1x32xf32>
    %20 = vector.extract_strided_slice %16 {offsets = [0, 96], sizes = [1, 32], strides = [1, 1]} : vector<1x128xf32> to vector<1x32xf32>
    %21 = arith.mulf %18, %8 : vector<1x32xf32>
    %22 = arith.mulf %17, %19 : vector<1x32xf32>
    %23 = arith.addf %21, %22 : vector<1x32xf32>
    %24 = math.tanh %23 : vector<1x32xf32>
    %25 = arith.mulf %20, %24 : vector<1x32xf32>
    %26 = vector.extract_strided_slice %5 {offsets = [1, 0], sizes = [1, 128], strides = [1, 1]} : vector<8x128xf32> to vector<1x128xf32>
    %cst_12 = arith.constant dense<0.000000e+00> : vector<1x128xf32>
    %27 = tpu.matmul %25, %6, %cst_12 {dimension_numbers = #tpu.dot_dimension_numbers<[1], [0], [0], [1], [0, 0, 1, 1], [], []>} : vector<1x32xf32>, vector<32x128xf32>, vector<1x128xf32> -> vector<1x128xf32>
    %28 = arith.addf %26, %27 : vector<1x128xf32>
    %29 = math.tanh %28 : vector<1x128xf32>
    %cst_13 = arith.constant 5.000000e-01 : f32
    %30 = vector.broadcast %cst_13 : f32 to vector<1x128xf32>
    %31 = arith.mulf %30, %29 : vector<1x128xf32>
    %cst_14 = arith.constant 5.000000e-01 : f32
    %32 = vector.broadcast %cst_14 : f32 to vector<1x128xf32>
    %33 = arith.addf %31, %32 : vector<1x128xf32>
    %34 = vector.extract_strided_slice %33 {offsets = [0, 0], sizes = [1, 32], strides = [1, 1]} : vector<1x128xf32> to vector<1x32xf32>
    %35 = vector.extract_strided_slice %33 {offsets = [0, 32], sizes = [1, 32], strides = [1, 1]} : vector<1x128xf32> to vector<1x32xf32>
    %36 = vector.extract_strided_slice %29 {offsets = [0, 64], sizes = [1, 32], strides = [1, 1]} : vector<1x128xf32> to vector<1x32xf32>
    %37 = vector.extract_strided_slice %33 {offsets = [0, 96], sizes = [1, 32], strides = [1, 1]} : vector<1x128xf32> to vector<1x32xf32>
    %38 = arith.mulf %35, %23 : vector<1x32xf32>
    %39 = arith.mulf %34, %36 : vector<1x32xf32>
    %40 = arith.addf %38, %39 : vector<1x32xf32>
    %41 = math.tanh %40 : vector<1x32xf32>
    %42 = arith.mulf %37, %41 : vector<1x32xf32>
    %43 = vector.extract_strided_slice %5 {offsets = [2, 0], sizes = [1, 128], strides = [1, 1]} : vector<8x128xf32> to vector<1x128xf32>
    %cst_15 = arith.constant dense<0.000000e+00> : vector<1x128xf32>
    %44 = tpu.matmul %42, %6, %cst_15 {dimension_numbers = #tpu.dot_dimension_numbers<[1], [0], [0], [1], [0, 0, 1, 1], [], []>} : vector<1x32xf32>, vector<32x128xf32>, vector<1x128xf32> -> vector<1x128xf32>
    %45 = arith.addf %43, %44 : vector<1x128xf32>
    %46 = math.tanh %45 : vector<1x128xf32>
    %cst_16 = arith.constant 5.000000e-01 : f32
    %47 = vector.broadcast %cst_16 : f32 to vector<1x128xf32>
    %48 = arith.mulf %47, %46 : vector<1x128xf32>
    %cst_17 = arith.constant 5.000000e-01 : f32
    %49 = vector.broadcast %cst_17 : f32 to vector<1x128xf32>
    %50 = arith.addf %48, %49 : vector<1x128xf32>
    %51 = vector.extract_strided_slice %50 {offsets = [0, 0], sizes = [1, 32], strides = [1, 1]} : vector<1x128xf32> to vector<1x32xf32>
    %52 = vector.extract_strided_slice %50 {offsets = [0, 32], sizes = [1, 32], strides = [1, 1]} : vector<1x128xf32> to vector<1x32xf32>
    %53 = vector.extract_strided_slice %46 {offsets = [0, 64], sizes = [1, 32], strides = [1, 1]} : vector<1x128xf32> to vector<1x32xf32>
    %54 = vector.extract_strided_slice %50 {offsets = [0, 96], sizes = [1, 32], strides = [1, 1]} : vector<1x128xf32> to vector<1x32xf32>
    %55 = arith.mulf %52, %40 : vector<1x32xf32>
    %56 = arith.mulf %51, %53 : vector<1x32xf32>
    %57 = arith.addf %55, %56 : vector<1x32xf32>
    %58 = math.tanh %57 : vector<1x32xf32>
    %59 = arith.mulf %54, %58 : vector<1x32xf32>
    %60 = vector.extract_strided_slice %5 {offsets = [3, 0], sizes = [1, 128], strides = [1, 1]} : vector<8x128xf32> to vector<1x128xf32>
    %cst_18 = arith.constant dense<0.000000e+00> : vector<1x128xf32>
    %61 = tpu.matmul %59, %6, %cst_18 {dimension_numbers = #tpu.dot_dimension_numbers<[1], [0], [0], [1], [0, 0, 1, 1], [], []>} : vector<1x32xf32>, vector<32x128xf32>, vector<1x128xf32> -> vector<1x128xf32>
    %62 = arith.addf %60, %61 : vector<1x128xf32>
    %63 = math.tanh %62 : vector<1x128xf32>
    %cst_19 = arith.constant 5.000000e-01 : f32
    %64 = vector.broadcast %cst_19 : f32 to vector<1x128xf32>
    %65 = arith.mulf %64, %63 : vector<1x128xf32>
    %cst_20 = arith.constant 5.000000e-01 : f32
    %66 = vector.broadcast %cst_20 : f32 to vector<1x128xf32>
    %67 = arith.addf %65, %66 : vector<1x128xf32>
    %68 = vector.extract_strided_slice %67 {offsets = [0, 0], sizes = [1, 32], strides = [1, 1]} : vector<1x128xf32> to vector<1x32xf32>
    %69 = vector.extract_strided_slice %67 {offsets = [0, 32], sizes = [1, 32], strides = [1, 1]} : vector<1x128xf32> to vector<1x32xf32>
    %70 = vector.extract_strided_slice %63 {offsets = [0, 64], sizes = [1, 32], strides = [1, 1]} : vector<1x128xf32> to vector<1x32xf32>
    %71 = vector.extract_strided_slice %67 {offsets = [0, 96], sizes = [1, 32], strides = [1, 1]} : vector<1x128xf32> to vector<1x32xf32>
    %72 = arith.mulf %69, %57 : vector<1x32xf32>
    %73 = arith.mulf %68, %70 : vector<1x32xf32>
    %74 = arith.addf %72, %73 : vector<1x32xf32>
    %75 = math.tanh %74 : vector<1x32xf32>
    %76 = arith.mulf %71, %75 : vector<1x32xf32>
    %77 = vector.extract_strided_slice %5 {offsets = [4, 0], sizes = [1, 128], strides = [1, 1]} : vector<8x128xf32> to vector<1x128xf32>
    %cst_21 = arith.constant dense<0.000000e+00> : vector<1x128xf32>
    %78 = tpu.matmul %76, %6, %cst_21 {dimension_numbers = #tpu.dot_dimension_numbers<[1], [0], [0], [1], [0, 0, 1, 1], [], []>} : vector<1x32xf32>, vector<32x128xf32>, vector<1x128xf32> -> vector<1x128xf32>
    %79 = arith.addf %77, %78 : vector<1x128xf32>
    %80 = math.tanh %79 : vector<1x128xf32>
    %cst_22 = arith.constant 5.000000e-01 : f32
    %81 = vector.broadcast %cst_22 : f32 to vector<1x128xf32>
    %82 = arith.mulf %81, %80 : vector<1x128xf32>
    %cst_23 = arith.constant 5.000000e-01 : f32
    %83 = vector.broadcast %cst_23 : f32 to vector<1x128xf32>
    %84 = arith.addf %82, %83 : vector<1x128xf32>
    %85 = vector.extract_strided_slice %84 {offsets = [0, 0], sizes = [1, 32], strides = [1, 1]} : vector<1x128xf32> to vector<1x32xf32>
    %86 = vector.extract_strided_slice %84 {offsets = [0, 32], sizes = [1, 32], strides = [1, 1]} : vector<1x128xf32> to vector<1x32xf32>
    %87 = vector.extract_strided_slice %80 {offsets = [0, 64], sizes = [1, 32], strides = [1, 1]} : vector<1x128xf32> to vector<1x32xf32>
    %88 = vector.extract_strided_slice %84 {offsets = [0, 96], sizes = [1, 32], strides = [1, 1]} : vector<1x128xf32> to vector<1x32xf32>
    %89 = arith.mulf %86, %74 : vector<1x32xf32>
    %90 = arith.mulf %85, %87 : vector<1x32xf32>
    %91 = arith.addf %89, %90 : vector<1x32xf32>
    %92 = math.tanh %91 : vector<1x32xf32>
    %93 = arith.mulf %88, %92 : vector<1x32xf32>
    %94 = vector.extract_strided_slice %5 {offsets = [5, 0], sizes = [1, 128], strides = [1, 1]} : vector<8x128xf32> to vector<1x128xf32>
    %cst_24 = arith.constant dense<0.000000e+00> : vector<1x128xf32>
    %95 = tpu.matmul %93, %6, %cst_24 {dimension_numbers = #tpu.dot_dimension_numbers<[1], [0], [0], [1], [0, 0, 1, 1], [], []>} : vector<1x32xf32>, vector<32x128xf32>, vector<1x128xf32> -> vector<1x128xf32>
    %96 = arith.addf %94, %95 : vector<1x128xf32>
    %97 = math.tanh %96 : vector<1x128xf32>
    %cst_25 = arith.constant 5.000000e-01 : f32
    %98 = vector.broadcast %cst_25 : f32 to vector<1x128xf32>
    %99 = arith.mulf %98, %97 : vector<1x128xf32>
    %cst_26 = arith.constant 5.000000e-01 : f32
    %100 = vector.broadcast %cst_26 : f32 to vector<1x128xf32>
    %101 = arith.addf %99, %100 : vector<1x128xf32>
    %102 = vector.extract_strided_slice %101 {offsets = [0, 0], sizes = [1, 32], strides = [1, 1]} : vector<1x128xf32> to vector<1x32xf32>
    %103 = vector.extract_strided_slice %101 {offsets = [0, 32], sizes = [1, 32], strides = [1, 1]} : vector<1x128xf32> to vector<1x32xf32>
    %104 = vector.extract_strided_slice %97 {offsets = [0, 64], sizes = [1, 32], strides = [1, 1]} : vector<1x128xf32> to vector<1x32xf32>
    %105 = vector.extract_strided_slice %101 {offsets = [0, 96], sizes = [1, 32], strides = [1, 1]} : vector<1x128xf32> to vector<1x32xf32>
    %106 = arith.mulf %103, %91 : vector<1x32xf32>
    %107 = arith.mulf %102, %104 : vector<1x32xf32>
    %108 = arith.addf %106, %107 : vector<1x32xf32>
    %109 = math.tanh %108 : vector<1x32xf32>
    %110 = arith.mulf %105, %109 : vector<1x32xf32>
    %111 = vector.extract_strided_slice %5 {offsets = [6, 0], sizes = [1, 128], strides = [1, 1]} : vector<8x128xf32> to vector<1x128xf32>
    %cst_27 = arith.constant dense<0.000000e+00> : vector<1x128xf32>
    %112 = tpu.matmul %110, %6, %cst_27 {dimension_numbers = #tpu.dot_dimension_numbers<[1], [0], [0], [1], [0, 0, 1, 1], [], []>} : vector<1x32xf32>, vector<32x128xf32>, vector<1x128xf32> -> vector<1x128xf32>
    %113 = arith.addf %111, %112 : vector<1x128xf32>
    %114 = math.tanh %113 : vector<1x128xf32>
    %cst_28 = arith.constant 5.000000e-01 : f32
    %115 = vector.broadcast %cst_28 : f32 to vector<1x128xf32>
    %116 = arith.mulf %115, %114 : vector<1x128xf32>
    %cst_29 = arith.constant 5.000000e-01 : f32
    %117 = vector.broadcast %cst_29 : f32 to vector<1x128xf32>
    %118 = arith.addf %116, %117 : vector<1x128xf32>
    %119 = vector.extract_strided_slice %118 {offsets = [0, 0], sizes = [1, 32], strides = [1, 1]} : vector<1x128xf32> to vector<1x32xf32>
    %120 = vector.extract_strided_slice %118 {offsets = [0, 32], sizes = [1, 32], strides = [1, 1]} : vector<1x128xf32> to vector<1x32xf32>
    %121 = vector.extract_strided_slice %114 {offsets = [0, 64], sizes = [1, 32], strides = [1, 1]} : vector<1x128xf32> to vector<1x32xf32>
    %122 = vector.extract_strided_slice %118 {offsets = [0, 96], sizes = [1, 32], strides = [1, 1]} : vector<1x128xf32> to vector<1x32xf32>
    %123 = arith.mulf %120, %108 : vector<1x32xf32>
    %124 = arith.mulf %119, %121 : vector<1x32xf32>
    %125 = arith.addf %123, %124 : vector<1x32xf32>
    %126 = math.tanh %125 : vector<1x32xf32>
    %127 = arith.mulf %122, %126 : vector<1x32xf32>
    %128 = vector.extract_strided_slice %5 {offsets = [7, 0], sizes = [1, 128], strides = [1, 1]} : vector<8x128xf32> to vector<1x128xf32>
    %cst_30 = arith.constant dense<0.000000e+00> : vector<1x128xf32>
    %129 = tpu.matmul %127, %6, %cst_30 {dimension_numbers = #tpu.dot_dimension_numbers<[1], [0], [0], [1], [0, 0, 1, 1], [], []>} : vector<1x32xf32>, vector<32x128xf32>, vector<1x128xf32> -> vector<1x128xf32>
    %130 = arith.addf %128, %129 : vector<1x128xf32>
    %131 = math.tanh %130 : vector<1x128xf32>
    %cst_31 = arith.constant 5.000000e-01 : f32
    %132 = vector.broadcast %cst_31 : f32 to vector<1x128xf32>
    %133 = arith.mulf %132, %131 : vector<1x128xf32>
    %cst_32 = arith.constant 5.000000e-01 : f32
    %134 = vector.broadcast %cst_32 : f32 to vector<1x128xf32>
    %135 = arith.addf %133, %134 : vector<1x128xf32>
    %136 = vector.extract_strided_slice %135 {offsets = [0, 0], sizes = [1, 32], strides = [1, 1]} : vector<1x128xf32> to vector<1x32xf32>
    %137 = vector.extract_strided_slice %135 {offsets = [0, 32], sizes = [1, 32], strides = [1, 1]} : vector<1x128xf32> to vector<1x32xf32>
    %138 = vector.extract_strided_slice %131 {offsets = [0, 64], sizes = [1, 32], strides = [1, 1]} : vector<1x128xf32> to vector<1x32xf32>
    %139 = vector.extract_strided_slice %135 {offsets = [0, 96], sizes = [1, 32], strides = [1, 1]} : vector<1x128xf32> to vector<1x32xf32>
    %140 = arith.mulf %137, %125 : vector<1x32xf32>
    %141 = arith.mulf %136, %138 : vector<1x32xf32>
    %142 = arith.addf %140, %141 : vector<1x32xf32>
    %143 = math.tanh %142 : vector<1x32xf32>
    %144 = arith.mulf %139, %143 : vector<1x32xf32>
    %145 = tpu.concatenate %25, %42, %59, %76, %93, %110, %127, %144 in 0 : vector<1x32xf32>, vector<1x32xf32>, vector<1x32xf32>, vector<1x32xf32>, vector<1x32xf32>, vector<1x32xf32>, vector<1x32xf32>, vector<1x32xf32> -> vector<8x32xf32>
    %c0_33 = arith.constant 0 : index
    %c0_34 = arith.constant 0 : index
    %146 = vector.load %arg4[%c0_33, %c0_34] : memref<32x8xf32, #tpu.memory_space<vmem>>, vector<32x8xf32>
    %cst_35 = arith.constant dense<0.000000e+00> : vector<8x8xf32>
    %147 = tpu.matmul %145, %146, %cst_35 {dimension_numbers = #tpu.dot_dimension_numbers<[1], [0], [0], [1], [0, 0, 1, 1], [], []>} : vector<8x32xf32>, vector<32x8xf32>, vector<8x8xf32> -> vector<8x8xf32>
    %c0_36 = arith.constant 0 : index
    %c0_37 = arith.constant 0 : index
    %148 = vector.load %arg5[%c0_36, %c0_37] : memref<1x8xf32, #tpu.memory_space<vmem>>, vector<1x8xf32>
    %149 = vector.broadcast %148 : vector<1x8xf32> to vector<8x8xf32>
    %150 = arith.addf %147, %149 : vector<8x8xf32>
    %cst_38 = arith.constant dense<0xFF800000> : vector<8xf32>
    %151 = vector.multi_reduction <maximumf>, %150, %cst_38 [1] : vector<8x8xf32> to vector<8xf32>
    %152 = vector.shape_cast %151 : vector<8xf32> to vector<8x1xf32>
    %153 = vector.broadcast %152 : vector<8x1xf32> to vector<8x8xf32>
    %154 = arith.subf %150, %153 : vector<8x8xf32>
    %155 = math.exp %154 : vector<8x8xf32>
    %cst_39 = arith.constant dense<0.000000e+00> : vector<8xf32>
    %156 = vector.multi_reduction <add>, %155, %cst_39 [1] : vector<8x8xf32> to vector<8xf32>
    %157 = vector.shape_cast %156 : vector<8xf32> to vector<8x1xf32>
    %158 = vector.broadcast %157 : vector<8x1xf32> to vector<8x8xf32>
    %159 = arith.divf %155, %158 : vector<8x8xf32>
    %c0_40 = arith.constant 0 : index
    %c0_41 = arith.constant 0 : index
    %160 = vector.load %arg6[%c0_40, %c0_41] : memref<8x8xf32, #tpu.memory_space<vmem>>, vector<8x8xf32>
    tpu.vector_store %arg6[%c0_40, %c0_41], %159 {strides = array<i32>} : memref<8x8xf32, #tpu.memory_space<vmem>>, vector<8x8xf32>,
    return
  }
}

</mosaic_0001>

<llo_original>
// kernel: tlstm_forward.1
$region0: #{tlstm_forward.1}
  #allocation0 [shape = 'u32[]', space=smem, size = 0x4, offset = 0x4, fixed_abs, tag = 'smem constant byte address 0x4 - core index']
  #allocation1 [shape = 'u32[144,128]{1,0:T(1,128)}', space=vmem, size = 0x12000, scoped, tag = 'internal scratch']
  %s0 = inlined_call_operand.hbm [shape: f32[8,16], index: 0, kind: input, shape index: {}]
  %s1 = inlined_call_operand.vmem [shape: f32[16,128], index: 1, kind: input, shape index: {}]
  %s2 = inlined_call_operand.vmem [shape: f32[32,128], index: 2, kind: input, shape index: {}]
  %s3 = inlined_call_operand.vmem [shape: f32[1,128], index: 3, kind: input, shape index: {}]
  %s4 = inlined_call_operand.vmem [shape: f32[32,8], index: 4, kind: input, shape index: {}]
  %s5 = inlined_call_operand.vmem [shape: f32[1,8], index: 5, kind: input, shape index: {}]
  %s6 = inlined_call_operand.hbm [shape: f32[8,8], index: 6, kind: output, shape index: {}]
  %s7 = sld [smem:[#allocation0]]
  $region38: #{tlstm_forward.1} parent=0
    _
  %s9 = ssub.s32 1, %s7
  %s10 = scalar_select 0, %s9, %s7
  $region1: #{tlstm_forward.1} parent=0
    #allocation2 [shape = 'u8[4096]{0}', space=vmem, size = 0x1000, scoped, tag = 'input window, operand 0, single buffered']
    #allocation3 [shape = 's32[1]{0}', space=sflag, size = 0x4, scoped, tag = 'scoped memory for tlstm_forward.1']
    #allocation4 [shape = 's32[1]{0}', space=sflag, size = 0x4, scoped, tag = 'scoped memory for tlstm_forward.1']
    #allocation5 [shape = 'u8[4096]{0}', space=vmem, size = 0x1000, scoped, tag = 'output window, operand 0, single buffered']
    %11 = vsyncpa [#allocation3], 0
    %12 = vsyncpa [#allocation4], 0
    // Predicated region
    $region2: #{tlstm_forward.1} parent=1 // pred_check
      _
    $region3: #{tlstm_forward.1} parent=1 // pred_check_branch
      %14 = sbr.rel (0) target = $region5
    $region4: #{tlstm_forward.1} parent=1 // pred_region
      %s16 = ssub.s32 128, 128
      %17 = vsyncadd [#allocation3], %s16
      %s19 = sshll.u32 [#allocation2], 4
      %s20 = int_to_ptr.vmem [resolvable:$true] %s19
      %22 = dma.hbm_to_vmem [thread:$0]  %s0, 128, %s20, [#allocation3]
    $region5: #{tlstm_forward.1} parent=1 // pred_fallthru
      _
    // Predicated region
    $region6: #{tlstm_forward.1} parent=1 // pred_check
      _
    $region7: #{tlstm_forward.1} parent=1 // pred_check_branch
      %24 = sbr.rel (0) target = $region9
    $region8: #{tlstm_forward.1} parent=1 // pred_region
      _
    $region9: #{tlstm_forward.1} parent=1 // pred_fallthru
      _
    // Predicated region
    $region10: #{tlstm_forward.1} parent=1 // pred_check
      _
    $region11: #{tlstm_forward.1} parent=1 // pred_check_branch
      %26 = sbr.rel (0) target = $region13
    $region12: #{tlstm_forward.1} parent=1 // pred_region
      _
    $region13: #{tlstm_forward.1} parent=1 // pred_fallthru
      _
    // Predicated region
    $region14: #{tlstm_forward.1} parent=1 // pred_check
      _
    $region15: #{tlstm_forward.1} parent=1 // pred_check_branch
      %28 = sbr.rel (0) target = $region17
    $region16: #{tlstm_forward.1} parent=1 // pred_region
      _
    $region17: #{tlstm_forward.1} parent=1 // pred_fallthru
      _
    // Predicated region
    $region18: #{tlstm_forward.1} parent=1 // pred_check
      _
    $region19: #{tlstm_forward.1} parent=1 // pred_check_branch
      %30 = sbr.rel (0) target = $region21
    $region20: #{tlstm_forward.1} parent=1 // pred_region
      _
    $region21: #{tlstm_forward.1} parent=1 // pred_fallthru
      _
    // Predicated region
    $region22: #{tlstm_forward.1} parent=1 // pred_check
      _
    $region23: #{tlstm_forward.1} parent=1 // pred_check_branch
      %32 = sbr.rel (0) target = $region25
    $region24: #{tlstm_forward.1} parent=1 // pred_region
      _
    $region25: #{tlstm_forward.1} parent=1 // pred_fallthru
      _
    // Predicated region
    $region26: #{tlstm_forward.1} parent=1 // pred_check
      _
    $region27: #{tlstm_forward.1} parent=1 // pred_check_branch
      %34 = sbr.rel (0) target = $region29
    $region28: #{tlstm_forward.1} parent=1 // pred_region
      %35 = dma.done [#allocation3], 128
    $region29: #{tlstm_forward.1} parent=1 // pred_fallthru
      _
    %v36 = vld [vmem:[#allocation2] sm:$0xff]
    %v37 = vld [vmem:[%s1] sm:$0xff]
    %v38 = vld [vmem:[%s1 + $0x8] sm:$0xff]
    %v39 = vld [vmem:[%s3] sm:$0x1]
    %v41 = vlaneseq
    %v42 = vshrl.u32 %v41, 7
    %v43 = vsub.s32 0, %v42
    %v44 = vrot.slane %v39, %v43
    %vm46 = vcmask 130048
    %v48 = vsel %vm46, %v36, 0
    %50 = vmatprep.subr.mxu0 0.0
    %51 = vmatpush1.msra.mxu0 %v37
    %52 = vmatprep.subr.mxu0 0.0
    %53 = vmatpush1.msra.mxu0 %v38
    %54 = vmatprep.subr.mxu0 0.0
    %55 = vmatpush1.msra.mxu0 0.0
    %56 = vmatprep.subr.mxu0 0.0
    %57 = vmatpush1.msra.mxu0 0.0
    %58 = vmatprep.subr.mxu0 0.0
    %59 = vmatpush1.msra.mxu0 0.0
    %60 = vmatprep.subr.mxu0 0.0
    %61 = vmatpush1.msra.mxu0 0.0
    %62 = vmatprep.subr.mxu0 0.0
    %63 = vmatpush1.msra.mxu0 0.0
    %64 = vmatprep.subr.mxu0 0.0
    %65 = vmatpush1.msra.mxu0 0.0
    %66 = vmatprep.subr.mxu0 0.0
    %67 = vmatpush1.msra.mxu0 0.0
    %68 = vmatprep.subr.mxu0 0.0
    %69 = vmatpush1.msra.mxu0 0.0
    %70 = vmatprep.subr.mxu0 0.0
    %71 = vmatpush1.msra.mxu0 0.0
    %72 = vmatprep.subr.mxu0 0.0
    %73 = vmatpush1.msra.mxu0 0.0
    %74 = vmatprep.subr.mxu0 0.0
    %75 = vmatpush1.msra.mxu0 0.0
    %76 = vmatprep.subr.mxu0 0.0
    %77 = vmatpush1.msra.mxu0 0.0
    %78 = vmatprep.subr.mxu0 0.0
    %79 = vmatpush1.msra.mxu0 0.0
    %80 = vmatprep.subr.mxu0 0.0
    %81 = vmatpush1.msra.mxu0 0.0
    %82 = vmatprep.subr.mxu0 0.0
    %83 = vmatpush1.msra.mxu0 0.0
    %84 = vmatprep.subr.mxu0 0.0
    %85 = vmatpush1.msra.mxu0 0.0
    %86 = vmatprep.subr.mxu0 0.0
    %87 = vmatpush1.msra.mxu0 0.0
    %88 = vmatprep.subr.mxu0 0.0
    %89 = vmatpush1.msra.mxu0 0.0
    %90 = vmatprep.subr.mxu0 0.0
    %91 = vmatpush1.msra.mxu0 0.0
    %92 = vmatprep.subr.mxu0 0.0
    %93 = vmatpush1.msra.mxu0 0.0
    %94 = vmatprep.subr.mxu0 0.0
    %95 = vmatpush1.msra.mxu0 0.0
    %96 = vmatprep.subr.mxu0 0.0
    %97 = vmatpush1.msra.mxu0 0.0
    %98 = vmatprep.subr.mxu0 0.0
    %99 = vmatpush1.msra.mxu0 0.0
    %100 = vmatprep.subr.mxu0 0.0
    %101 = vmatpush1.msra.mxu0 0.0
    %102 = vmatprep.subr.mxu0 0.0
    %103 = vmatpush1.msra.mxu0 0.0
    %104 = vmatprep.subr.mxu0 0.0
    %105 = vmatpush1.msra.mxu0 0.0
    %106 = vmatprep.subr.mxu0 0.0
    %107 = vmatpush1.msra.mxu0 0.0
    %108 = vmatprep.subr.mxu0 0.0
    %109 = vmatpush1.msra.mxu0 0.0
    %110 = vmatprep.subr.mxu0 0.0
    %111 = vmatpush1.msra.mxu0 0.0
    %112 = vmatprep.subr.mxu0 0.0
    %113 = vmatpush1.msra.mxu0 0.0
    %114 = vmatprep.mubr.f32.mxu0 0.0
    %115 = vmatmul.mubr.f32.gmra.mrb[0].mxu0 %v48
    %v116 = vpop.f32.mrb[0].mxu0
    %v117 = vadd.f32 %v44, %v116
    %v118 = vpop.f32.mrb[0].mxu0
    %119 = vdwg.mxu0
    %v120 = vld [vmem:[%s2] sm:$0xff]
    %v121 = vld [vmem:[%s2 + $0x8] sm:$0xff]
    %v122 = vld [vmem:[%s2 + $0x10] sm:$0xff]
    %v123 = vld [vmem:[%s2 + $0x18] sm:$0xff]
    %vm124 = vcmask 261120
    %v126 = vsel %vm124, 0.0, 0
    %128 = vmatprep.subr.mxu0 0.0
    %129 = vmatpush1.msra.mxu0 %v120
    %130 = vmatprep.subr.mxu0 0.0
    %131 = vmatpush1.msra.mxu0 %v121
    %132 = vmatprep.subr.mxu0 0.0
    %133 = vmatpush1.msra.mxu0 %v122
    %134 = vmatprep.subr.mxu0 0.0
    %135 = vmatpush1.msra.mxu0 %v123
    %136 = vmatprep.subr.mxu0 0.0
    %137 = vmatpush1.msra.mxu0 0.0
    %138 = vmatprep.subr.mxu0 0.0
    %139 = vmatpush1.msra.mxu0 0.0
    %140 = vmatprep.subr.mxu0 0.0
    %141 = vmatpush1.msra.mxu0 0.0
    %142 = vmatprep.subr.mxu0 0.0
    %143 = vmatpush1.msra.mxu0 0.0
    %144 = vmatprep.subr.mxu0 0.0
    %145 = vmatpush1.msra.mxu0 0.0
    %146 = vmatprep.subr.mxu0 0.0
    %147 = vmatpush1.msra.mxu0 0.0
    %148 = vmatprep.subr.mxu0 0.0
    %149 = vmatpush1.msra.mxu0 0.0
    %150 = vmatprep.subr.mxu0 0.0
    %151 = vmatpush1.msra.mxu0 0.0
    %152 = vmatprep.subr.mxu0 0.0
    %153 = vmatpush1.msra.mxu0 0.0
    %154 = vmatprep.subr.mxu0 0.0
    %155 = vmatpush1.msra.mxu0 0.0
    %156 = vmatprep.subr.mxu0 0.0
    %157 = vmatpush1.msra.mxu0 0.0
    %158 = vmatprep.subr.mxu0 0.0
    %159 = vmatpush1.msra.mxu0 0.0
    %160 = vmatprep.subr.mxu0 0.0
    %161 = vmatpush1.msra.mxu0 0.0
    %162 = vmatprep.subr.mxu0 0.0
    %163 = vmatpush1.msra.mxu0 0.0
    %164 = vmatprep.subr.mxu0 0.0
    %165 = vmatpush1.msra.mxu0 0.0
    %166 = vmatprep.subr.mxu0 0.0
    %167 = vmatpush1.msra.mxu0 0.0
    %168 = vmatprep.subr.mxu0 0.0
    %169 = vmatpush1.msra.mxu0 0.0
    %170 = vmatprep.subr.mxu0 0.0
    %171 = vmatpush1.msra.mxu0 0.0
    %172 = vmatprep.subr.mxu0 0.0
    %173 = vmatpush1.msra.mxu0 0.0
    %174 = vmatprep.subr.mxu0 0.0
    %175 = vmatpush1.msra.mxu0 0.0
    %176 = vmatprep.subr.mxu0 0.0
    %177 = vmatpush1.msra.mxu0 0.0
    %178 = vmatprep.subr.mxu0 0.0
    %179 = vmatpush1.msra.mxu0 0.0
    %180 = vmatprep.subr.mxu0 0.0
    %181 = vmatpush1.msra.mxu0 0.0
    %182 = vmatprep.subr.mxu0 0.0
    %183 = vmatpush1.msra.mxu0 0.0
    %184 = vmatprep.subr.mxu0 0.0
    %185 = vmatpush1.msra.mxu0 0.0
    %186 = vmatprep.subr.mxu0 0.0
    %187 = vmatpush1.msra.mxu0 0.0
    %188 = vmatprep.subr.mxu0 0.0
    %189 = vmatpush1.msra.mxu0 0.0
    %190 = vmatprep.subr.mxu0 0.0
    %191 = vmatpush1.msra.mxu0 0.0
    %192 = vmatprep.mubr.f32.mxu0 0.0
    %193 = vmatmul.mubr.f32.gmra.mrb[0].mxu0 %v126
    %v194 = vpop.f32.mrb[0].mxu0
    %v195 = vadd.f32 0.0, %v194
    %v196 = vpop.f32.mrb[0].mxu0
    %197 = vdwg.mxu0
    %v198 = vadd.f32 %v117, %v195
    %v199 = vtanh.pop %v198
    %v200 = vmul.f32 %v199, 0.5
    %v201 = vadd.f32 %v200, 0.5
    %v202 = vmul.f32 %v201, 0.0
    %204 = vrot.lane.b32.xlu0 %v199, 64
    %v205 = vpop.permute.xlu0 %204
    %v207 = vmul.f32 %v201, %v205
    %209 = vrot.lane.b32.xlu0 %v207, 32
    %v210 = vpop.permute.xlu0 %209
    %v212 = vadd.f32 %v202, %v210
    %v213 = vtanh.pop %v212
    %215 = vrot.lane.b32.xlu0 %v213, 64
    %v216 = vpop.permute.xlu0 %215
    %v218 = vmul.f32 %v201, %v216
    %220 = vrot.lane.b32.xlu0 %v218, 32
    %v221 = vpop.permute.xlu0 %220
    %v222 = vsel %vm124, %v221, 0
    %224 = vmatprep.subr.mxu0 0.0
    %225 = vmatpush1.msra.mxu0 %v120
    %226 = vmatprep.subr.mxu0 0.0
    %227 = vmatpush1.msra.mxu0 %v121
    %228 = vmatprep.subr.mxu0 0.0
    %229 = vmatpush1.msra.mxu0 %v122
    %230 = vmatprep.subr.mxu0 0.0
    %231 = vmatpush1.msra.mxu0 %v123
    %232 = vmatprep.subr.mxu0 0.0
    %233 = vmatpush1.msra.mxu0 0.0
    %234 = vmatprep.subr.mxu0 0.0
    %235 = vmatpush1.msra.mxu0 0.0
    %236 = vmatprep.subr.mxu0 0.0
    %237 = vmatpush1.msra.mxu0 0.0
    %238 = vmatprep.subr.mxu0 0.0
    %239 = vmatpush1.msra.mxu0 0.0
    %240 = vmatprep.subr.mxu0 0.0
    %241 = vmatpush1.msra.mxu0 0.0
    %242 = vmatprep.subr.mxu0 0.0
    %243 = vmatpush1.msra.mxu0 0.0
    %244 = vmatprep.subr.mxu0 0.0
    %245 = vmatpush1.msra.mxu0 0.0
    %246 = vmatprep.subr.mxu0 0.0
    %247 = vmatpush1.msra.mxu0 0.0
    %248 = vmatprep.subr.mxu0 0.0
    %249 = vmatpush1.msra.mxu0 0.0
    %250 = vmatprep.subr.mxu0 0.0
    %251 = vmatpush1.msra.mxu0 0.0
    %252 = vmatprep.subr.mxu0 0.0
    %253 = vmatpush1.msra.mxu0 0.0
    %254 = vmatprep.subr.mxu0 0.0
    %255 = vmatpush1.msra.mxu0 0.0
    %256 = vmatprep.subr.mxu0 0.0
    %257 = vmatpush1.msra.mxu0 0.0
    %258 = vmatprep.subr.mxu0 0.0
    %259 = vmatpush1.msra.mxu0 0.0
    %260 = vmatprep.subr.mxu0 0.0
    %261 = vmatpush1.msra.mxu0 0.0
    %262 = vmatprep.subr.mxu0 0.0
    %263 = vmatpush1.msra.mxu0 0.0
    %264 = vmatprep.subr.mxu0 0.0
    %265 = vmatpush1.msra.mxu0 0.0
    %266 = vmatprep.subr.mxu0 0.0
    %267 = vmatpush1.msra.mxu0 0.0
    %268 = vmatprep.subr.mxu0 0.0
    %269 = vmatpush1.msra.mxu0 0.0
    %270 = vmatprep.subr.mxu0 0.0
    %271 = vmatpush1.msra.mxu0 0.0
    %272 = vmatprep.subr.mxu0 0.0
    %273 = vmatpush1.msra.mxu0 0.0
    %274 = vmatprep.subr.mxu0 0.0
    %275 = vmatpush1.msra.mxu0 0.0
    %276 = vmatprep.subr.mxu0 0.0
    %277 = vmatpush1.msra.mxu0 0.0
    %278 = vmatprep.subr.mxu0 0.0
    %279 = vmatpush1.msra.mxu0 0.0
    %280 = vmatprep.subr.mxu0 0.0
    %281 = vmatpush1.msra.mxu0 0.0
    %282 = vmatprep.subr.mxu0 0.0
    %283 = vmatpush1.msra.mxu0 0.0
    %284 = vmatprep.subr.mxu0 0.0
    %285 = vmatpush1.msra.mxu0 0.0
    %286 = vmatprep.subr.mxu0 0.0
    %287 = vmatpush1.msra.mxu0 0.0
    %288 = vmatprep.mubr.f32.mxu0 0.0
    %289 = vmatmul.mubr.f32.gmra.mrb[0].mxu0 %v222
    %v290 = vpop.f32.mrb[0].mxu0
    %v291 = vadd.f32 0.0, %v290
    %v292 = vpop.f32.mrb[0].mxu0
    %293 = vdwg.mxu0
    %v295 = vrot.slane %v291, 7
    %v297 = vadd.f32 %v117, %v295
    %v298 = vtanh.pop %v297
    %v299 = vmul.f32 %v298, 0.5
    %v300 = vadd.f32 %v299, 0.5
    %v302 = vrot.slane %v212, 7
    %v304 = vmul.f32 %v300, %v302
    %306 = vrot.lane.b32.xlu0 %v298, 64
    %v307 = vpop.permute.xlu0 %306
    %v309 = vmul.f32 %v300, %v307
    %311 = vrot.lane.b32.xlu0 %v309, 32
    %v312 = vpop.permute.xlu0 %311
    %v314 = vadd.f32 %v304, %v312
    %v315 = vtanh.pop %v314
    %317 = vrot.lane.b32.xlu0 %v315, 64
    %v318 = vpop.permute.xlu0 %317
    %v320 = vmul.f32 %v300, %v318
    %v322 = vrot.slane %v320, 1
    %323 = vrot.lane.b32.xlu0 %v322, 32
    %v324 = vpop.permute.xlu0 %323
    %v325 = vsel %vm124, %v324, 0
    %327 = vmatprep.subr.mxu0 0.0
    %328 = vmatpush1.msra.mxu0 %v120
    %329 = vmatprep.subr.mxu0 0.0
    %330 = vmatpush1.msra.mxu0 %v121
    %331 = vmatprep.subr.mxu0 0.0
    %332 = vmatpush1.msra.mxu0 %v122
    %333 = vmatprep.subr.mxu0 0.0
    %334 = vmatpush1.msra.mxu0 %v123
    %335 = vmatprep.subr.mxu0 0.0
    %336 = vmatpush1.msra.mxu0 0.0
    %337 = vmatprep.subr.mxu0 0.0
    %338 = vmatpush1.msra.mxu0 0.0
    %339 = vmatprep.subr.mxu0 0.0
    %340 = vmatpush1.msra.mxu0 0.0
    %341 = vmatprep.subr.mxu0 0.0
    %342 = vmatpush1.msra.mxu0 0.0
    %343 = vmatprep.subr.mxu0 0.0
    %344 = vmatpush1.msra.mxu0 0.0
    %345 = vmatprep.subr.mxu0 0.0
    %346 = vmatpush1.msra.mxu0 0.0
    %347 = vmatprep.subr.mxu0 0.0
    %348 = vmatpush1.msra.mxu0 0.0
    %349 = vmatprep.subr.mxu0 0.0
    %350 = vmatpush1.msra.mxu0 0.0
    %351 = vmatprep.subr.mxu0 0.0
    %352 = vmatpush1.msra.mxu0 0.0
    %353 = vmatprep.subr.mxu0 0.0
    %354 = vmatpush1.msra.mxu0 0.0
    %355 = vmatprep.subr.mxu0 0.0
    %356 = vmatpush1.msra.mxu0 0.0
    %357 = vmatprep.subr.mxu0 0.0
    %358 = vmatpush1.msra.mxu0 0.0
    %359 = vmatprep.subr.mxu0 0.0
    %360 = vmatpush1.msra.mxu0 0.0
    %361 = vmatprep.subr.mxu0 0.0
    %362 = vmatpush1.msra.mxu0 0.0
    %363 = vmatprep.subr.mxu0 0.0
    %364 = vmatpush1.msra.mxu0 0.0
    %365 = vmatprep.subr.mxu0 0.0
    %366 = vmatpush1.msra.mxu0 0.0
    %367 = vmatprep.subr.mxu0 0.0
    %368 = vmatpush1.msra.mxu0 0.0
    %369 = vmatprep.subr.mxu0 0.0
    %370 = vmatpush1.msra.mxu0 0.0
    %371 = vmatprep.subr.mxu0 0.0
    %372 = vmatpush1.msra.mxu0 0.0
    %373 = vmatprep.subr.mxu0 0.0
    %374 = vmatpush1.msra.mxu0 0.0
    %375 = vmatprep.subr.mxu0 0.0
    %376 = vmatpush1.msra.mxu0 0.0
    %377 = vmatprep.subr.mxu0 0.0
    %378 = vmatpush1.msra.mxu0 0.0
    %379 = vmatprep.subr.mxu0 0.0
    %380 = vmatpush1.msra.mxu0 0.0
    %381 = vmatprep.subr.mxu0 0.0
    %382 = vmatpush1.msra.mxu0 0.0
    %383 = vmatprep.subr.mxu0 0.0
    %384 = vmatpush1.msra.mxu0 0.0
    %385 = vmatprep.subr.mxu0 0.0
    %386 = vmatpush1.msra.mxu0 0.0
    %387 = vmatprep.subr.mxu0 0.0
    %388 = vmatpush1.msra.mxu0 0.0
    %389 = vmatprep.subr.mxu0 0.0
    %390 = vmatpush1.msra.mxu0 0.0
    %391 = vmatprep.mubr.f32.mxu0 0.0
    %392 = vmatmul.mubr.f32.gmra.mrb[0].mxu0 %v325
    %v393 = vpop.f32.mrb[0].mxu0
    %v394 = vadd.f32 0.0, %v393
    %v395 = vpop.f32.mrb[0].mxu0
    %396 = vdwg.mxu0
    %v398 = vrot.slane %v394, 6
    %v400 = vadd.f32 %v117, %v398
    %v401 = vtanh.pop %v400
    %v402 = vmul.f32 %v401, 0.5
    %v403 = vadd.f32 %v402, 0.5
    %v405 = vrot.slane %v314, 7
    %v407 = vmul.f32 %v403, %v405
    %409 = vrot.lane.b32.xlu0 %v401, 64
    %v410 = vpop.permute.xlu0 %409
    %v412 = vmul.f32 %v403, %v410
    %414 = vrot.lane.b32.xlu0 %v412, 32
    %v415 = vpop.permute.xlu0 %414
    %v417 = vadd.f32 %v407, %v415
    %v418 = vtanh.pop %v417
    %420 = vrot.lane.b32.xlu0 %v418, 64
    %v421 = vpop.permute.xlu0 %420
    %v423 = vmul.f32 %v403, %v421
    %v425 = vrot.slane %v423, 2
    %426 = vrot.lane.b32.xlu0 %v425, 32
    %v427 = vpop.permute.xlu0 %426
    %v428 = vsel %vm124, %v427, 0
    %430 = vmatprep.subr.mxu0 0.0
    %431 = vmatpush1.msra.mxu0 %v120
    %432 = vmatprep.subr.mxu0 0.0
    %433 = vmatpush1.msra.mxu0 %v121
    %434 = vmatprep.subr.mxu0 0.0
    %435 = vmatpush1.msra.mxu0 %v122
    %436 = vmatprep.subr.mxu0 0.0
    %437 = vmatpush1.msra.mxu0 %v123
    %438 = vmatprep.subr.mxu0 0.0
    %439 = vmatpush1.msra.mxu0 0.0
    %440 = vmatprep.subr.mxu0 0.0
    %441 = vmatpush1.msra.mxu0 0.0
    %442 = vmatprep.subr.mxu0 0.0
    %443 = vmatpush1.msra.mxu0 0.0
    %444 = vmatprep.subr.mxu0 0.0
    %445 = vmatpush1.msra.mxu0 0.0
    %446 = vmatprep.subr.mxu0 0.0
    %447 = vmatpush1.msra.mxu0 0.0
    %448 = vmatprep.subr.mxu0 0.0
    %449 = vmatpush1.msra.mxu0 0.0
    %450 = vmatprep.subr.mxu0 0.0
    %451 = vmatpush1.msra.mxu0 0.0
    %452 = vmatprep.subr.mxu0 0.0
    %453 = vmatpush1.msra.mxu0 0.0
    %454 = vmatprep.subr.mxu0 0.0
    %455 = vmatpush1.msra.mxu0 0.0
    %456 = vmatprep.subr.mxu0 0.0
    %457 = vmatpush1.msra.mxu0 0.0
    %458 = vmatprep.subr.mxu0 0.0
    %459 = vmatpush1.msra.mxu0 0.0
    %460 = vmatprep.subr.mxu0 0.0
    %461 = vmatpush1.msra.mxu0 0.0
    %462 = vmatprep.subr.mxu0 0.0
    %463 = vmatpush1.msra.mxu0 0.0
    %464 = vmatprep.subr.mxu0 0.0
    %465 = vmatpush1.msra.mxu0 0.0
    %466 = vmatprep.subr.mxu0 0.0
    %467 = vmatpush1.msra.mxu0 0.0
    %468 = vmatprep.subr.mxu0 0.0
    %469 = vmatpush1.msra.mxu0 0.0
    %470 = vmatprep.subr.mxu0 0.0
    %471 = vmatpush1.msra.mxu0 0.0
    %472 = vmatprep.subr.mxu0 0.0
    %473 = vmatpush1.msra.mxu0 0.0
    %474 = vmatprep.subr.mxu0 0.0
    %475 = vmatpush1.msra.mxu0 0.0
    %476 = vmatprep.subr.mxu0 0.0
    %477 = vmatpush1.msra.mxu0 0.0
    %478 = vmatprep.subr.mxu0 0.0
    %479 = vmatpush1.msra.mxu0 0.0
    %480 = vmatprep.subr.mxu0 0.0
    %481 = vmatpush1.msra.mxu0 0.0
    %482 = vmatprep.subr.mxu0 0.0
    %483 = vmatpush1.msra.mxu0 0.0
    %484 = vmatprep.subr.mxu0 0.0
    %485 = vmatpush1.msra.mxu0 0.0
    %486 = vmatprep.subr.mxu0 0.0
    %487 = vmatpush1.msra.mxu0 0.0
    %488 = vmatprep.subr.mxu0 0.0
    %489 = vmatpush1.msra.mxu0 0.0
    %490 = vmatprep.subr.mxu0 0.0
    %491 = vmatpush1.msra.mxu0 0.0
    %492 = vmatprep.subr.mxu0 0.0
    %493 = vmatpush1.msra.mxu0 0.0
    %494 = vmatprep.mubr.f32.mxu0 0.0
    %495 = vmatmul.mubr.f32.gmra.mrb[0].mxu0 %v428
    %v496 = vpop.f32.mrb[0].mxu0
    %v497 = vadd.f32 0.0, %v496
    %v498 = vpop.f32.mrb[0].mxu0
    %499 = vdwg.mxu0
    %v501 = vrot.slane %v497, 5
    %v503 = vadd.f32 %v117, %v501
    %v504 = vtanh.pop %v503
    %v505 = vmul.f32 %v504, 0.5
    %v506 = vadd.f32 %v505, 0.5
    %v508 = vrot.slane %v417, 7
    %v510 = vmul.f32 %v506, %v508
    %512 = vrot.lane.b32.xlu0 %v504, 64
    %v513 = vpop.permute.xlu0 %512
    %v515 = vmul.f32 %v506, %v513
    %517 = vrot.lane.b32.xlu0 %v515, 32
    %v518 = vpop.permute.xlu0 %517
    %v520 = vadd.f32 %v510, %v518
    %v521 = vtanh.pop %v520
    %523 = vrot.lane.b32.xlu0 %v521, 64
    %v524 = vpop.permute.xlu0 %523
    %v526 = vmul.f32 %v506, %v524
    %v528 = vrot.slane %v526, 3
    %529 = vrot.lane.b32.xlu0 %v528, 32
    %v530 = vpop.permute.xlu0 %529
    %v531 = vsel %vm124, %v530, 0
    %533 = vmatprep.subr.mxu0 0.0
    %534 = vmatpush1.msra.mxu0 %v120
    %535 = vmatprep.subr.mxu0 0.0
    %536 = vmatpush1.msra.mxu0 %v121
    %537 = vmatprep.subr.mxu0 0.0
    %538 = vmatpush1.msra.mxu0 %v122
    %539 = vmatprep.subr.mxu0 0.0
    %540 = vmatpush1.msra.mxu0 %v123
    %541 = vmatprep.subr.mxu0 0.0
    %542 = vmatpush1.msra.mxu0 0.0
    %543 = vmatprep.subr.mxu0 0.0
    %544 = vmatpush1.msra.mxu0 0.0
    %545 = vmatprep.subr.mxu0 0.0
    %546 = vmatpush1.msra.mxu0 0.0
    %547 = vmatprep.subr.mxu0 0.0
    %548 = vmatpush1.msra.mxu0 0.0
    %549 = vmatprep.subr.mxu0 0.0
    %550 = vmatpush1.msra.mxu0 0.0
    %551 = vmatprep.subr.mxu0 0.0
    %552 = vmatpush1.msra.mxu0 0.0
    %553 = vmatprep.subr.mxu0 0.0
    %554 = vmatpush1.msra.mxu0 0.0
    %555 = vmatprep.subr.mxu0 0.0
    %556 = vmatpush1.msra.mxu0 0.0
    %557 = vmatprep.subr.mxu0 0.0
    %558 = vmatpush1.msra.mxu0 0.0
    %559 = vmatprep.subr.mxu0 0.0
    %560 = vmatpush1.msra.mxu0 0.0
    %561 = vmatprep.subr.mxu0 0.0
    %562 = vmatpush1.msra.mxu0 0.0
    %563 = vmatprep.subr.mxu0 0.0
    %564 = vmatpush1.msra.mxu0 0.0
    %565 = vmatprep.subr.mxu0 0.0
    %566 = vmatpush1.msra.mxu0 0.0
    %567 = vmatprep.subr.mxu0 0.0
    %568 = vmatpush1.msra.mxu0 0.0
    %569 = vmatprep.subr.mxu0 0.0
    %570 = vmatpush1.msra.mxu0 0.0
    %571 = vmatprep.subr.mxu0 0.0
    %572 = vmatpush1.msra.mxu0 0.0
    %573 = vmatprep.subr.mxu0 0.0
    %574 = vmatpush1.msra.mxu0 0.0
    %575 = vmatprep.subr.mxu0 0.0
    %576 = vmatpush1.msra.mxu0 0.0
    %577 = vmatprep.subr.mxu0 0.0
    %578 = vmatpush1.msra.mxu0 0.0
    %579 = vmatprep.subr.mxu0 0.0
    %580 = vmatpush1.msra.mxu0 0.0
    %581 = vmatprep.subr.mxu0 0.0
    %582 = vmatpush1.msra.mxu0 0.0
    %583 = vmatprep.subr.mxu0 0.0
    %584 = vmatpush1.msra.mxu0 0.0
    %585 = vmatprep.subr.mxu0 0.0
    %586 = vmatpush1.msra.mxu0 0.0
    %587 = vmatprep.subr.mxu0 0.0
    %588 = vmatpush1.msra.mxu0 0.0
    %589 = vmatprep.subr.mxu0 0.0
    %590 = vmatpush1.msra.mxu0 0.0
    %591 = vmatprep.subr.mxu0 0.0
    %592 = vmatpush1.msra.mxu0 0.0
    %593 = vmatprep.subr.mxu0 0.0
    %594 = vmatpush1.msra.mxu0 0.0
    %595 = vmatprep.subr.mxu0 0.0
    %596 = vmatpush1.msra.mxu0 0.0
    %597 = vmatprep.mubr.f32.mxu0 0.0
    %598 = vmatmul.mubr.f32.gmra.mrb[0].mxu0 %v531
    %v599 = vpop.f32.mrb[0].mxu0
    %v600 = vadd.f32 0.0, %v599
    %v601 = vpop.f32.mrb[0].mxu0
    %602 = vdwg.mxu0
    %v604 = vrot.slane %v600, 4
    %v606 = vadd.f32 %v117, %v604
    %v607 = vtanh.pop %v606
    %v608 = vmul.f32 %v607, 0.5
    %v609 = vadd.f32 %v608, 0.5
    %v611 = vrot.slane %v520, 7
    %v613 = vmul.f32 %v609, %v611
    %615 = vrot.lane.b32.xlu0 %v607, 64
    %v616 = vpop.permute.xlu0 %615
    %v618 = vmul.f32 %v609, %v616
    %620 = vrot.lane.b32.xlu0 %v618, 32
    %v621 = vpop.permute.xlu0 %620
    %v623 = vadd.f32 %v613, %v621
    %v624 = vtanh.pop %v623
    %626 = vrot.lane.b32.xlu0 %v624, 64
    %v627 = vpop.permute.xlu0 %626
    %v629 = vmul.f32 %v609, %v627
    %v631 = vrot.slane %v629, 4
    %632 = vrot.lane.b32.xlu0 %v631, 32
    %v633 = vpop.permute.xlu0 %632
    %v634 = vsel %vm124, %v633, 0
    %636 = vmatprep.subr.mxu0 0.0
    %637 = vmatpush1.msra.mxu0 %v120
    %638 = vmatprep.subr.mxu0 0.0
    %639 = vmatpush1.msra.mxu0 %v121
    %640 = vmatprep.subr.mxu0 0.0
    %641 = vmatpush1.msra.mxu0 %v122
    %642 = vmatprep.subr.mxu0 0.0
    %643 = vmatpush1.msra.mxu0 %v123
    %644 = vmatprep.subr.mxu0 0.0
    %645 = vmatpush1.msra.mxu0 0.0
    %646 = vmatprep.subr.mxu0 0.0
    %647 = vmatpush1.msra.mxu0 0.0
    %648 = vmatprep.subr.mxu0 0.0
    %649 = vmatpush1.msra.mxu0 0.0
    %650 = vmatprep.subr.mxu0 0.0
    %651 = vmatpush1.msra.mxu0 0.0
    %652 = vmatprep.subr.mxu0 0.0
    %653 = vmatpush1.msra.mxu0 0.0
    %654 = vmatprep.subr.mxu0 0.0
    %655 = vmatpush1.msra.mxu0 0.0
    %656 = vmatprep.subr.mxu0 0.0
    %657 = vmatpush1.msra.mxu0 0.0
    %658 = vmatprep.subr.mxu0 0.0
    %659 = vmatpush1.msra.mxu0 0.0
    %660 = vmatprep.subr.mxu0 0.0
    %661 = vmatpush1.msra.mxu0 0.0
    %662 = vmatprep.subr.mxu0 0.0
    %663 = vmatpush1.msra.mxu0 0.0
    %664 = vmatprep.subr.mxu0 0.0
    %665 = vmatpush1.msra.mxu0 0.0
    %666 = vmatprep.subr.mxu0 0.0
    %667 = vmatpush1.msra.mxu0 0.0
    %668 = vmatprep.subr.mxu0 0.0
    %669 = vmatpush1.msra.mxu0 0.0
    %670 = vmatprep.subr.mxu0 0.0
    %671 = vmatpush1.msra.mxu0 0.0
    %672 = vmatprep.subr.mxu0 0.0
    %673 = vmatpush1.msra.mxu0 0.0
    %674 = vmatprep.subr.mxu0 0.0
    %675 = vmatpush1.msra.mxu0 0.0
    %676 = vmatprep.subr.mxu0 0.0
    %677 = vmatpush1.msra.mxu0 0.0
    %678 = vmatprep.subr.mxu0 0.0
    %679 = vmatpush1.msra.mxu0 0.0
    %680 = vmatprep.subr.mxu0 0.0
    %681 = vmatpush1.msra.mxu0 0.0
    %682 = vmatprep.subr.mxu0 0.0
    %683 = vmatpush1.msra.mxu0 0.0
    %684 = vmatprep.subr.mxu0 0.0
    %685 = vmatpush1.msra.mxu0 0.0
    %686 = vmatprep.subr.mxu0 0.0
    %687 = vmatpush1.msra.mxu0 0.0
    %688 = vmatprep.subr.mxu0 0.0
    %689 = vmatpush1.msra.mxu0 0.0
    %690 = vmatprep.subr.mxu0 0.0
    %691 = vmatpush1.msra.mxu0 0.0
    %692 = vmatprep.subr.mxu0 0.0
    %693 = vmatpush1.msra.mxu0 0.0
    %694 = vmatprep.subr.mxu0 0.0
    %695 = vmatpush1.msra.mxu0 0.0
    %696 = vmatprep.subr.mxu0 0.0
    %697 = vmatpush1.msra.mxu0 0.0
    %698 = vmatprep.subr.mxu0 0.0
    %699 = vmatpush1.msra.mxu0 0.0
    %700 = vmatprep.mubr.f32.mxu0 0.0
    %701 = vmatmul.mubr.f32.gmra.mrb[0].mxu0 %v634
    %v702 = vpop.f32.mrb[0].mxu0
    %v703 = vadd.f32 0.0, %v702
    %v704 = vpop.f32.mrb[0].mxu0
    %705 = vdwg.mxu0
    %v707 = vrot.slane %v703, 3
    %v709 = vadd.f32 %v117, %v707
    %v710 = vtanh.pop %v709
    %v711 = vmul.f32 %v710, 0.5
    %v712 = vadd.f32 %v711, 0.5
    %v714 = vrot.slane %v623, 7
    %v716 = vmul.f32 %v712, %v714
    %718 = vrot.lane.b32.xlu0 %v710, 64
    %v719 = vpop.permute.xlu0 %718
    %v721 = vmul.f32 %v712, %v719
    %723 = vrot.lane.b32.xlu0 %v721, 32
    %v724 = vpop.permute.xlu0 %723
    %v726 = vadd.f32 %v716, %v724
    %v727 = vtanh.pop %v726
    %729 = vrot.lane.b32.xlu0 %v727, 64
    %v730 = vpop.permute.xlu0 %729
    %v732 = vmul.f32 %v712, %v730
    %v734 = vrot.slane %v732, 5
    %735 = vrot.lane.b32.xlu0 %v734, 32
    %v736 = vpop.permute.xlu0 %735
    %v737 = vsel %vm124, %v736, 0
    %739 = vmatprep.subr.mxu0 0.0
    %740 = vmatpush1.msra.mxu0 %v120
    %741 = vmatprep.subr.mxu0 0.0
    %742 = vmatpush1.msra.mxu0 %v121
    %743 = vmatprep.subr.mxu0 0.0
    %744 = vmatpush1.msra.mxu0 %v122
    %745 = vmatprep.subr.mxu0 0.0
    %746 = vmatpush1.msra.mxu0 %v123
    %747 = vmatprep.subr.mxu0 0.0
    %748 = vmatpush1.msra.mxu0 0.0
    %749 = vmatprep.subr.mxu0 0.0
    %750 = vmatpush1.msra.mxu0 0.0
    %751 = vmatprep.subr.mxu0 0.0
    %752 = vmatpush1.msra.mxu0 0.0
    %753 = vmatprep.subr.mxu0 0.0
    %754 = vmatpush1.msra.mxu0 0.0
    %755 = vmatprep.subr.mxu0 0.0
    %756 = vmatpush1.msra.mxu0 0.0
    %757 = vmatprep.subr.mxu0 0.0
    %758 = vmatpush1.msra.mxu0 0.0
    %759 = vmatprep.subr.mxu0 0.0
    %760 = vmatpush1.msra.mxu0 0.0
    %761 = vmatprep.subr.mxu0 0.0
    %762 = vmatpush1.msra.mxu0 0.0
    %763 = vmatprep.subr.mxu0 0.0
    %764 = vmatpush1.msra.mxu0 0.0
    %765 = vmatprep.subr.mxu0 0.0
    %766 = vmatpush1.msra.mxu0 0.0
    %767 = vmatprep.subr.mxu0 0.0
    %768 = vmatpush1.msra.mxu0 0.0
    %769 = vmatprep.subr.mxu0 0.0
    %770 = vmatpush1.msra.mxu0 0.0
    %771 = vmatprep.subr.mxu0 0.0
    %772 = vmatpush1.msra.mxu0 0.0
    %773 = vmatprep.subr.mxu0 0.0
    %774 = vmatpush1.msra.mxu0 0.0
    %775 = vmatprep.subr.mxu0 0.0
    %776 = vmatpush1.msra.mxu0 0.0
    %777 = vmatprep.subr.mxu0 0.0
    %778 = vmatpush1.msra.mxu0 0.0
    %779 = vmatprep.subr.mxu0 0.0
    %780 = vmatpush1.msra.mxu0 0.0
    %781 = vmatprep.subr.mxu0 0.0
    %782 = vmatpush1.msra.mxu0 0.0
    %783 = vmatprep.subr.mxu0 0.0
    %784 = vmatpush1.msra.mxu0 0.0
    %785 = vmatprep.subr.mxu0 0.0
    %786 = vmatpush1.msra.mxu0 0.0
    %787 = vmatprep.subr.mxu0 0.0
    %788 = vmatpush1.msra.mxu0 0.0
    %789 = vmatprep.subr.mxu0 0.0
    %790 = vmatpush1.msra.mxu0 0.0
    %791 = vmatprep.subr.mxu0 0.0
    %792 = vmatpush1.msra.mxu0 0.0
    %793 = vmatprep.subr.mxu0 0.0
    %794 = vmatpush1.msra.mxu0 0.0
    %795 = vmatprep.subr.mxu0 0.0
    %796 = vmatpush1.msra.mxu0 0.0
    %797 = vmatprep.subr.mxu0 0.0
    %798 = vmatpush1.msra.mxu0 0.0
    %799 = vmatprep.subr.mxu0 0.0
    %800 = vmatpush1.msra.mxu0 0.0
    %801 = vmatprep.subr.mxu0 0.0
    %802 = vmatpush1.msra.mxu0 0.0
    %803 = vmatprep.mubr.f32.mxu0 0.0
    %804 = vmatmul.mubr.f32.gmra.mrb[0].mxu0 %v737
    %v805 = vpop.f32.mrb[0].mxu0
    %v806 = vadd.f32 0.0, %v805
    %v807 = vpop.f32.mrb[0].mxu0
    %808 = vdwg.mxu0
    %v810 = vrot.slane %v806, 2
    %v812 = vadd.f32 %v117, %v810
    %v813 = vtanh.pop %v812
    %v814 = vmul.f32 %v813, 0.5
    %v815 = vadd.f32 %v814, 0.5
    %v817 = vrot.slane %v726, 7
    %v819 = vmul.f32 %v815, %v817
    %821 = vrot.lane.b32.xlu0 %v813, 64
    %v822 = vpop.permute.xlu0 %821
    %v824 = vmul.f32 %v815, %v822
    %826 = vrot.lane.b32.xlu0 %v824, 32
    %v827 = vpop.permute.xlu0 %826
    %v829 = vadd.f32 %v819, %v827
    %v830 = vtanh.pop %v829
    %832 = vrot.lane.b32.xlu0 %v830, 64
    %v833 = vpop.permute.xlu0 %832
    %v835 = vmul.f32 %v815, %v833
    %v837 = vrot.slane %v835, 6
    %838 = vrot.lane.b32.xlu0 %v837, 32
    %v839 = vpop.permute.xlu0 %838
    %v840 = vsel %vm124, %v839, 0
    %842 = vmatprep.subr.mxu0 0.0
    %843 = vmatpush1.msra.mxu0 %v120
    %844 = vmatprep.subr.mxu0 0.0
    %845 = vmatpush1.msra.mxu0 %v121
    %846 = vmatprep.subr.mxu0 0.0
    %847 = vmatpush1.msra.mxu0 %v122
    %848 = vmatprep.subr.mxu0 0.0
    %849 = vmatpush1.msra.mxu0 %v123
    %850 = vmatprep.subr.mxu0 0.0
    %851 = vmatpush1.msra.mxu0 0.0
    %852 = vmatprep.subr.mxu0 0.0
    %853 = vmatpush1.msra.mxu0 0.0
    %854 = vmatprep.subr.mxu0 0.0
    %855 = vmatpush1.msra.mxu0 0.0
    %856 = vmatprep.subr.mxu0 0.0
    %857 = vmatpush1.msra.mxu0 0.0
    %858 = vmatprep.subr.mxu0 0.0
    %859 = vmatpush1.msra.mxu0 0.0
    %860 = vmatprep.subr.mxu0 0.0
    %861 = vmatpush1.msra.mxu0 0.0
    %862 = vmatprep.subr.mxu0 0.0
    %863 = vmatpush1.msra.mxu0 0.0
    %864 = vmatprep.subr.mxu0 0.0
    %865 = vmatpush1.msra.mxu0 0.0
    %866 = vmatprep.subr.mxu0 0.0
    %867 = vmatpush1.msra.mxu0 0.0
    %868 = vmatprep.subr.mxu0 0.0
    %869 = vmatpush1.msra.mxu0 0.0
    %870 = vmatprep.subr.mxu0 0.0
    %871 = vmatpush1.msra.mxu0 0.0
    %872 = vmatprep.subr.mxu0 0.0
    %873 = vmatpush1.msra.mxu0 0.0
    %874 = vmatprep.subr.mxu0 0.0
    %875 = vmatpush1.msra.mxu0 0.0
    %876 = vmatprep.subr.mxu0 0.0
    %877 = vmatpush1.msra.mxu0 0.0
    %878 = vmatprep.subr.mxu0 0.0
    %879 = vmatpush1.msra.mxu0 0.0
    %880 = vmatprep.subr.mxu0 0.0
    %881 = vmatpush1.msra.mxu0 0.0
    %882 = vmatprep.subr.mxu0 0.0
    %883 = vmatpush1.msra.mxu0 0.0
    %884 = vmatprep.subr.mxu0 0.0
    %885 = vmatpush1.msra.mxu0 0.0
    %886 = vmatprep.subr.mxu0 0.0
    %887 = vmatpush1.msra.mxu0 0.0
    %888 = vmatprep.subr.mxu0 0.0
    %889 = vmatpush1.msra.mxu0 0.0
    %890 = vmatprep.subr.mxu0 0.0
    %891 = vmatpush1.msra.mxu0 0.0
    %892 = vmatprep.subr.mxu0 0.0
    %893 = vmatpush1.msra.mxu0 0.0
    %894 = vmatprep.subr.mxu0 0.0
    %895 = vmatpush1.msra.mxu0 0.0
    %896 = vmatprep.subr.mxu0 0.0
    %897 = vmatpush1.msra.mxu0 0.0
    %898 = vmatprep.subr.mxu0 0.0
    %899 = vmatpush1.msra.mxu0 0.0
    %900 = vmatprep.subr.mxu0 0.0
    %901 = vmatpush1.msra.mxu0 0.0
    %902 = vmatprep.subr.mxu0 0.0
    %903 = vmatpush1.msra.mxu0 0.0
    %904 = vmatprep.subr.mxu0 0.0
    %905 = vmatpush1.msra.mxu0 0.0
    %906 = vmatprep.mubr.f32.mxu0 0.0
    %907 = vmatmul.mubr.f32.gmra.mrb[0].mxu0 %v840
    %v908 = vpop.f32.mrb[0].mxu0
    %v909 = vadd.f32 0.0, %v908
    %v910 = vpop.f32.mrb[0].mxu0
    %911 = vdwg.mxu0
    %v913 = vrot.slane %v909, 1
    %v915 = vadd.f32 %v117, %v913
    %v916 = vtanh.pop %v915
    %v917 = vmul.f32 %v916, 0.5
    %v918 = vadd.f32 %v917, 0.5
    %v920 = vrot.slane %v829, 7
    %v922 = vmul.f32 %v918, %v920
    %924 = vrot.lane.b32.xlu0 %v916, 64
    %v925 = vpop.permute.xlu0 %924
    %v927 = vmul.f32 %v918, %v925
    %929 = vrot.lane.b32.xlu0 %v927, 32
    %v930 = vpop.permute.xlu0 %929
    %v932 = vadd.f32 %v922, %v930
    %v933 = vtanh.pop %v932
    %935 = vrot.lane.b32.xlu0 %v933, 64
    %v936 = vpop.permute.xlu0 %935
    %v938 = vmul.f32 %v918, %v936
    %vm939 = vcmask 1040384
    %v940 = vsel %vm939, %v218, %v320
    %vm941 = vcmask 1041408
    %v942 = vsel %vm941, %v940, %v423
    %vm943 = vcmask 1042432
    %v944 = vsel %vm943, %v942, %v526
    %vm945 = vcmask 1043456
    %v946 = vsel %vm945, %v944, %v629
    %vm947 = vcmask 1044480
    %v948 = vsel %vm947, %v946, %v732
    %vm949 = vcmask 1045504
    %v950 = vsel %vm949, %v948, %v835
    %vm951 = vcmask 1046528
    %v952 = vsel %vm951, %v950, %v938
    %v953 = vld [vmem:[%s4] sm:$0xff]
    %v954 = vld [vmem:[%s4 + $0x8] sm:$0xff]
    %v955 = vld [vmem:[%s4 + $0x10] sm:$0xff]
    %v956 = vld [vmem:[%s4 + $0x18] sm:$0xff]
    %v957 = vld [vmem:[%s5] sm:$0x1]
    %v959 = vlaneseq
    %v960 = vshrl.u32 %v959, 7
    %v961 = vsub.s32 0, %v960
    %v962 = vrot.slane %v957, %v961
    %965 = vrot.lane.b32.xlu0 %v952, 32
    %v966 = vpop.permute.xlu0 %965
    %v967 = vsel %vm124, %v966, 0
    %969 = vmatprep.subr.mxu0 0.0
    %970 = vmatpush1.msra.mxu0 %v953
    %971 = vmatprep.subr.mxu0 0.0
    %972 = vmatpush1.msra.mxu0 %v954
    %973 = vmatprep.subr.mxu0 0.0
    %974 = vmatpush1.msra.mxu0 %v955
    %975 = vmatprep.subr.mxu0 0.0
    %976 = vmatpush1.msra.mxu0 %v956
    %977 = vmatprep.subr.mxu0 0.0
    %978 = vmatpush1.msra.mxu0 0.0
    %979 = vmatprep.subr.mxu0 0.0
    %980 = vmatpush1.msra.mxu0 0.0
    %981 = vmatprep.subr.mxu0 0.0
    %982 = vmatpush1.msra.mxu0 0.0
    %983 = vmatprep.subr.mxu0 0.0
    %984 = vmatpush1.msra.mxu0 0.0
    %985 = vmatprep.subr.mxu0 0.0
    %986 = vmatpush1.msra.mxu0 0.0
    %987 = vmatprep.subr.mxu0 0.0
    %988 = vmatpush1.msra.mxu0 0.0
    %989 = vmatprep.subr.mxu0 0.0
    %990 = vmatpush1.msra.mxu0 0.0
    %991 = vmatprep.subr.mxu0 0.0
    %992 = vmatpush1.msra.mxu0 0.0
    %993 = vmatprep.subr.mxu0 0.0
    %994 = vmatpush1.msra.mxu0 0.0
    %995 = vmatprep.subr.mxu0 0.0
    %996 = vmatpush1.msra.mxu0 0.0
    %997 = vmatprep.subr.mxu0 0.0
    %998 = vmatpush1.msra.mxu0 0.0
    %999 = vmatprep.subr.mxu0 0.0
    %1000 = vmatpush1.msra.mxu0 0.0
    %1001 = vmatprep.subr.mxu0 0.0
    %1002 = vmatpush1.msra.mxu0 0.0
    %1003 = vmatprep.subr.mxu0 0.0
    %1004 = vmatpush1.msra.mxu0 0.0
    %1005 = vmatprep.subr.mxu0 0.0
    %1006 = vmatpush1.msra.mxu0 0.0
    %1007 = vmatprep.subr.mxu0 0.0
    %1008 = vmatpush1.msra.mxu0 0.0
    %1009 = vmatprep.subr.mxu0 0.0
    %1010 = vmatpush1.msra.mxu0 0.0
    %1011 = vmatprep.subr.mxu0 0.0
    %1012 = vmatpush1.msra.mxu0 0.0
    %1013 = vmatprep.subr.mxu0 0.0
    %1014 = vmatpush1.msra.mxu0 0.0
    %1015 = vmatprep.subr.mxu0 0.0
    %1016 = vmatpush1.msra.mxu0 0.0
    %1017 = vmatprep.subr.mxu0 0.0
    %1018 = vmatpush1.msra.mxu0 0.0
    %1019 = vmatprep.subr.mxu0 0.0
    %1020 = vmatpush1.msra.mxu0 0.0
    %1021 = vmatprep.subr.mxu0 0.0
    %1022 = vmatpush1.msra.mxu0 0.0
    %1023 = vmatprep.subr.mxu0 0.0
    %1024 = vmatpush1.msra.mxu0 0.0
    %1025 = vmatprep.subr.mxu0 0.0
    %1026 = vmatpush1.msra.mxu0 0.0
    %1027 = vmatprep.subr.mxu0 0.0
    %1028 = vmatpush1.msra.mxu0 0.0
    %1029 = vmatprep.subr.mxu0 0.0
    %1030 = vmatpush1.msra.mxu0 0.0
    %1031 = vmatprep.subr.mxu0 0.0
    %1032 = vmatpush1.msra.mxu0 0.0
    %1033 = vmatprep.mubr.f32.mxu0 0.0
    %1034 = vmatmul.mubr.f32.gmra.mrb[0].mxu0 %v967
    %v1035 = vpop.f32.mrb[0].mxu0
    %v1036 = vadd.f32 %v962, %v1035
    %v1037 = vpop.f32.mrb[0].mxu0
    %1038 = vdwg.mxu0
    %vm1039 = vcmask 64512
    %v1040 = vsel %vm1039, %v1036, -inf
    %1041 = vmax.xlane.f32.xlu0 %v1040
    %v1042 = vpop.xlane.xlu0 %1041
    %v1043 = vsub.f32 %v1036, %v1042
    %v1044 = vmul.f32 %v1043, 1.442695
    %v1045 = vpow.pop %v1044
    %v1046 = vsel %vm1039, %v1045, 0.0
    %1047 = vadd.xlane.f32.xlu0 %v1046
    %v1048 = vpop.xlane.xlu0 %1047
    %v1049 = vrcp.pop %v1048
    %v1050 = vmul.f32 %v1045, %v1049
    %1051 = vst.msk [vmem:[#allocation5] sm:$0xff] %vm1039, %v1050
    // Predicated region
    $region30: #{tlstm_forward.1} parent=1 // pred_check
      _
    $region31: #{tlstm_forward.1} parent=1 // pred_check_branch
      %1053 = sbr.rel (0) target = $region33
    $region32: #{tlstm_forward.1} parent=1 // pred_region
      %s1055 = ssub.s32 128, 128
      %1056 = vsyncadd [#allocation4], %s1055
      %s1058 = sshll.u32 [#allocation5], 4
      %s1059 = int_to_ptr.vmem [resolvable:$true] %s1058
      %1061 = dma.vmem_to_hbm [thread:$0]  %s1059, 128, %s6, [#allocation4]
    $region33: #{tlstm_forward.1} parent=1 // pred_fallthru
      _
    // Predicated region
    $region34: #{tlstm_forward.1} parent=1 // pred_check
      _
    $region35: #{tlstm_forward.1} parent=1 // pred_check_branch
      %1063 = sbr.rel (0) target = $region37
    $region36: #{tlstm_forward.1} parent=1 // pred_region
      %1064 = dma.done [#allocation4], 128
    $region37: #{tlstm_forward.1} parent=1 // pred_fallthru
      _
    %1065 = vsyncpa [#allocation3], 1
    %1066 = vsyncpa [#allocation4], 1

</llo_original>
